<compile_context>
chip_gen: v5e
topology: v5e:2x2
jax: 0.10.0
libtpu: 0.0.40
codegen_flags: <defaults>
</compile_context>

<pallas_src>
import functools

import jax
import jax.numpy as jnp
from jax.experimental import pallas as pl
from jax.experimental.pallas import tpu as pltpu


def _ray_march_kernel(mask_ref, colors_ref, dens_ref, depths_ref,
                      rgb_ref, weights_ref, aux_ref,
                      *, white_back, clamp_mode):
    f32 = jnp.float32
    C, S, _ = colors_ref.shape

    d = depths_ref[...].astype(f32)          # [S, TN]
    dens = dens_ref[...].astype(f32)         # [S, TN]

    # Shifted copies materialised once each and reused.
    d_lo = d[:-1, :]                         # [Sm, TN]
    d_hi = d[1:, :]                          # [Sm, TN]
    deltas = d_hi - d_lo                     # [Sm, TN]
    d_sum = d_lo + d_hi                      # == 2 * depths_mid

    dens_mid = (dens[:-1, :] + dens[1:, :]) * 0.5

    if clamp_mode == "softplus":
        x = dens_mid - 1.0
        # stable softplus: max(x,0) + log(1 + exp(-|x|))
        dens_mid = jnp.maximum(x, 0.0) + jnp.log(1.0 + jnp.exp(-jnp.abs(x)))
    else:
        dens_mid = jnp.maximum(dens_mid, 0.0)

    density_delta = dens_mid * deltas                     # [Sm, TN]
    alpha = 1.0 - jnp.exp(-density_delta)

    # Exclusive cumulative sum over samples on the MXU (otherwise idle):
    #   excl[j, n] = sum_{k<j} density_delta[k, n]
    #   trans[j]   = exp(-excl[j]) = prod_{k<j} (1 - alpha_k),  T_0 = 1
    excl = jnp.dot(mask_ref[...], density_delta,
                   preferred_element_type=f32,
                   precision=jax.lax.Precision.HIGHEST)
    trans = jnp.exp(-excl)                                # [Sm, TN]

    weights = alpha * trans                               # [Sm, TN]
    weights_ref[...] = weights.astype(weights_ref.dtype)

    wtot = jnp.sum(weights, axis=0, keepdims=True)        # [1, TN]
    # 0.5 midpoint factor folded onto the [1,TN] result (no depths_mid temp).
    depth_num = 0.5 * jnp.sum(weights * d_sum, axis=0, keepdims=True)
    comp_depth = depth_num / wtot
    # torch.nan_to_num(x, inf): NaN -> +inf; +/-inf handling coincides with
    # torch after the wrapper-side clamp to [min(depths), max(depths)].
    comp_depth = jnp.where(jnp.isnan(comp_depth), jnp.inf, comp_depth)

    # Smeared per-sample weights: u[s] = 0.5*(w[s-1] + w[s]) with w[-1]=w[Sm]=0,
    # so rgb[c] = sum_s u[s] * colors[c, s, :] and neither colors_mid nor the
    # [C,Sm,TN] product ever materialises.
    zero_row = jnp.zeros_like(weights[:1, :])
    u = 0.5 * (jnp.concatenate([zero_row, weights], axis=0)
               + jnp.concatenate([weights, zero_row], axis=0))   # [S, TN]

    for c in range(C):                        # unrolled; C is small
        col_c = colors_ref[c, :, :].astype(f32)                  # [S, TN] slab
        row = jnp.sum(col_c * u, axis=0, keepdims=True)          # [1, TN]
        if white_back:
            row = row + 1.0 - wtot
        rgb_ref[c:c + 1, :] = row.astype(rgb_ref.dtype)

    # Direct row writes (no sublane concat temp).  Rows 1/2 feed the wrapper's
    # exact torch.min/max(depths) clamp without an extra HBM pass over depths.
    aux_ref[0:1, :] = comp_depth
    aux_ref[1:2, :] = jnp.min(d, axis=0, keepdims=True)
    aux_ref[2:3, :] = jnp.max(d, axis=0, keepdims=True)


def _round_up(x, m):
    return (x + m - 1) // m * m


def _vmem_budget():
    """Generation-aware (tile budget, vmem_limit_bytes):
    ~56 / 64 MiB on v5e & v6e (128 MiB physical VMEM), ~40 / 48 MiB on v7x
    (64 MiB per-TC VMEM)."""
    try:
        phys = int(pltpu.get_tpu_info().vmem_capacity_bytes)
    except Exception:
        phys = 64 * 1024 * 1024            # conservative fallback
    limit = min(64 * 1024 * 1024, phys * 3 // 4)
    budget = limit - 8 * 1024 * 1024
    return budget, limit


def _pick_tile_rays(n, s, c, itemsizes, budget, max_tile_rays=None):
    """Largest ray tile (multiple of 128 lanes) whose double-buffered I/O tiles
    plus live f32 intermediates fit the VMEM budget.  Taking the largest tile
    that fits also satisfies the >=1-4 MB-per-grid-step DMA target for small
    S/C configs.  When the ray count allows, keep >=2 grid steps so v7x
    megacore can split the ray axis across both TensorCores."""
    sm = s - 1
    col_b, den_b, dep_b = itemsizes
    in_per_ray = c * s * col_b + s * (den_b + dep_b)
    out_per_ray = (c + sm + 3) * 4
    live_per_ray = 4 * (4 * s + 14 * sm + 2 * c + 8)      # rough, f32
    per_ray = 2 * (in_per_ray + out_per_ray) + live_per_ray
    tn = (budget // per_ray) // 128 * 128
    n_ceil = _round_up(n, 128)
    tn = min(tn, n_ceil)
    if max_tile_rays is not None:
        tn = min(tn, _round_up(max_tile_rays, 128))
    if n_ceil > 128:                                       # >=2 grid steps
        tn = min(tn, _round_up(-(-n // 2), 128))
    return int(max(128, tn))


def mip_ray_marcher2_lanes(colors_csn, densities_sn, depths_sn,
                           rendering_options, *, max_tile_rays=None):
    """Transpose-free lane-dense path.

    colors_csn [C,S,N], densities_sn [S,N], depths_sn [S,N] (any float dtype;
    math in f32).  Returns rgb [C,N], composite_depth [N], weights [S-1,N].
    Use this entry point when the upstream MLP emits / the downstream
    importance sampler consumes the rays-on-lanes layout: the extra HBM
    relayout passes of the PyTorch-layout wrapper disappear."""
    C, S, N = colors_csn.shape
    Sm = S - 1

    budget, vmem_limit = _vmem_budget()
    TN = _pick_tile_rays(
        N, S, C,
        (colors_csn.dtype.itemsize, densities_sn.dtype.itemsize,
         depths_sn.dtype.itemsize),
        budget, max_tile_rays)
    N_pad = _round_up(N, TN)
    if N_pad != N:
        pad = N_pad - N
        colors_csn = jnp.pad(colors_csn, ((0, 0), (0, 0), (0, pad)))
        densities_sn = jnp.pad(densities_sn, ((0, 0), (0, pad)))
        depths_sn = jnp.pad(depths_sn, ((0, 0), (0, pad)))

    # Loop-invariant strictly-lower-triangular ones matrix for the MXU
    # exclusive cumsum (constant index_map -> fetched once).
    idx = jnp.arange(Sm, dtype=jnp.int32)
    excl_mask = (idx[None, :] < idx[:, None]).astype(jnp.float32)  # [Sm, Sm]

    kernel = functools.partial(
        _ray_march_kernel,
        white_back=bool(rendering_options.get("white_back", False)),
        clamp_mode=rendering_options.get("clamp_mode", "softplus"),
    )

    rgb_t, weights_t, aux = pl.pallas_call(
        kernel,
        out_shape=(
            jax.ShapeDtypeStruct((C, N_pad), jnp.float32),
            jax.ShapeDtypeStruct((Sm, N_pad), jnp.float32),
            jax.ShapeDtypeStruct((3, N_pad), jnp.float32),
        ),
        grid_spec=pltpu.PrefetchScalarGridSpec(
            num_scalar_prefetch=0,
            grid=(N_pad // TN,),
            in_specs=[
                pl.BlockSpec((Sm, Sm), lambda i: (0, 0)),        # cumsum mask
                pl.BlockSpec((C, S, TN), lambda i: (0, 0, i)),   # colors  [C,S,N]
                pl.BlockSpec((S, TN), lambda i: (0, i)),         # densities [S,N]
                pl.BlockSpec((S, TN), lambda i: (0, i)),         # depths    [S,N]
            ],
            out_specs=[
                pl.BlockSpec((C, TN), lambda i: (0, i)),         # rgb     [C,N]
                pl.BlockSpec((Sm, TN), lambda i: (0, i)),        # weights [Sm,N]
                pl.BlockSpec((3, TN), lambda i: (0, i)),         # depth/min/max
            ],
        ),
        compiler_params=pltpu.CompilerParams(
            dimension_semantics=("parallel",),
            vmem_limit_bytes=vmem_limit,
        ),
    )(excl_mask, colors_csn, densities_sn, depths_sn)

    # Global clamp bounds == torch.min(depths)/torch.max(depths), reduced from
    # the per-ray rows (N elements instead of N*S).
    dmin = jnp.min(aux[1, :N])
    dmax = jnp.max(aux[2, :N])
    comp_depth = jnp.clip(aux[0, :N], dmin, dmax)
    return rgb_t[:, :N], comp_depth, weights_t[:, :N]


def mip_ray_marcher2(colors, densities, depths, rendering_options,
                     *, max_tile_rays=None):
    """PyTorch-layout interface: colors [B,R,S,C], densities/depths [B,R,S,1].

    NOTE: this interface needs one relayout pass each way (rays -> lanes and
    back).  If the surrounding pipeline can produce/consume the lane-dense
    layout, use `mip_ray_marcher2_lanes` and those extra HBM passes vanish."""
    B, R, S, C = colors.shape
    N = B * R
    Sm = S - 1

    colors_t = jnp.transpose(colors.reshape(N, S, C), (2, 1, 0))   # [C, S, N]
    dens_t = jnp.transpose(densities.reshape(N, S), (1, 0))        # [S, N]
    depths_t = jnp.transpose(depths.reshape(N, S), (1, 0))         # [S, N]

    rgb_t, comp_depth, weights_t = mip_ray_marcher2_lanes(
        colors_t, dens_t, depths_t, rendering_options,
        max_tile_rays=max_tile_rays)

    composite_rgb = jnp.transpose(rgb_t, (1, 0)).reshape(B, R, C)
    composite_depth = comp_depth.reshape(B, R, 1)
    weights_out = jnp.transpose(weights_t, (1, 0)).reshape(B, R, Sm, 1)
    return composite_rgb, composite_depth, weights_out


def _reference_forward(colors, densities, depths, rendering_options):
    """Pure-JAX transcription of MipRayMarcher2.run_forward (for verification)."""
    deltas = depths[:, :, 1:] - depths[:, :, :-1]
    colors_mid = (colors[:, :, :-1] + colors[:, :, 1:]) / 2
    densities_mid = (densities[:, :, :-1] + densities[:, :, 1:]) / 2
    depths_mid = (depths[:, :, :-1] + depths[:, :, 1:]) / 2
    if rendering_options.get("clamp_mode", "softplus") == "softplus":
        densities_mid = jax.nn.softplus(densities_mid - 1.0)
    else:
        densities_mid = jnp.maximum(densities_mid, 0.0)
    density_delta = densities_mid * deltas
    alpha = 1 - jnp.exp(-density_delta)
    alpha_shifted = jnp.concatenate(
        [jnp.ones_like(alpha[:, :, :1]), 1 - alpha + 1e-10], axis=-2)
    weights = alpha * jnp.cumprod(alpha_shifted, axis=-2)[:, :, :-1]
    composite_rgb = jnp.sum(weights * colors_mid, axis=-2)
    weight_total = weights.sum(2)
    composite_depth = jnp.sum(weights * depths_mid, axis=-2) / weight_total
    composite_depth = jnp.nan_to_num(composite_depth, nan=jnp.inf)
    composite_depth = jnp.clip(composite_depth, jnp.min(depths), jnp.max(depths))
    if rendering_options.get("white_back", False):
        composite_rgb = composite_rgb + 1 - weight_total
    return composite_rgb, composite_depth, weights


if __name__ == "__main__":
    key = jax.random.PRNGKey(0)
    B, R, S, C = 2, 64, 8, 3
    kc, kd, kz = jax.random.split(key, 3)
    colors = jax.random.uniform(kc, (B, R, S, C), jnp.float32)
    densities = jax.random.normal(kd, (B, R, S, 1), jnp.float32)
    depths = jnp.sort(
        jax.random.uniform(kz, (B, R, S, 1), jnp.float32, minval=2.0, maxval=6.0),
        axis=2)
    rendering_options = {"clamp_mode": "softplus", "white_back": True}

    rgb, depth, weights = mip_ray_marcher2(colors, densities, depths, rendering_options)
    jax.block_until_ready((rgb, depth, weights))

    # correctness check against a pure-JAX reference
    rgb_ref, depth_ref, w_ref = _reference_forward(colors, densities, depths, rendering_options)
    assert rgb.shape == (B, R, C) and depth.shape == (B, R, 1) and weights.shape == (B, R, S - 1, 1)
    assert jnp.allclose(rgb, rgb_ref, atol=1e-4, rtol=1e-3)
    assert jnp.allclose(depth, depth_ref, atol=1e-4, rtol=1e-3)
    assert jnp.allclose(weights, w_ref, atol=1e-4, rtol=1e-3)

    # transpose-free lane-dense entry point agrees with the default path
    N = B * R
    rgb_l, depth_l, w_l = mip_ray_marcher2_lanes(
        jnp.transpose(colors.reshape(N, S, C), (2, 1, 0)),
        jnp.transpose(densities.reshape(N, S), (1, 0)),
        jnp.transpose(depths.reshape(N, S), (1, 0)),
        rendering_options)
    jax.block_until_ready((rgb_l, depth_l, w_l))
    assert jnp.allclose(jnp.transpose(rgb_l, (1, 0)).reshape(B, R, C), rgb, atol=1e-6)
    assert jnp.allclose(depth_l.reshape(B, R, 1), depth, atol=1e-6)
    assert jnp.allclose(jnp.transpose(w_l, (1, 0)).reshape(B, R, S - 1, 1), weights, atol=1e-6)

    print("KERNEL_OK")
</pallas_src>

<mosaic_0001>
module attributes {stable_mosaic.version = 11 : i64} {
  func.func @_ray_march_kernel(%arg0: i32, %arg1: memref<7x7xf32, #tpu.memory_space<vmem>>, %arg2: memref<3x8x128xf32, #tpu.memory_space<vmem>>, %arg3: memref<8x128xf32, #tpu.memory_space<vmem>>, %arg4: memref<8x128xf32, #tpu.memory_space<vmem>>, %arg5: memref<3x128xf32, #tpu.memory_space<vmem>>, %arg6: memref<7x128xf32, #tpu.memory_space<vmem>>, %arg7: memref<3x128xf32, #tpu.memory_space<vmem>>) attributes {dimension_semantics = [#tpu.dimension_semantics<parallel>], iteration_bounds = array<i64: 1>, scalar_prefetch = 0 : i64, scratch_operands = 0 : i64, tpu.core_type = #tpu.core_type<tc>, window_params = [{pipeline_mode = #tpu.pipeline_mode<synchronous>, transform_indices = @transform_0, window_bounds = array<i64: 7, 7>}, {transform_indices = @transform_1, window_bounds = array<i64: 3, 8, 128>}, {transform_indices = @transform_2, window_bounds = array<i64: 8, 128>}, {transform_indices = @transform_3, window_bounds = array<i64: 8, 128>}, {transform_indices = @transform_4, window_bounds = array<i64: 3, 128>}, {transform_indices = @transform_5, window_bounds = array<i64: 7, 128>}, {transform_indices = @transform_6, window_bounds = array<i64: 3, 128>}]} {
    %c0 = arith.constant 0 : index
    %c0_0 = arith.constant 0 : index
    %0 = vector.load %arg4[%c0, %c0_0] : memref<8x128xf32, #tpu.memory_space<vmem>>, vector<8x128xf32>
    %c0_1 = arith.constant 0 : index
    %c0_2 = arith.constant 0 : index
    %1 = vector.load %arg3[%c0_1, %c0_2] : memref<8x128xf32, #tpu.memory_space<vmem>>, vector<8x128xf32>
    %2 = vector.extract_strided_slice %0 {offsets = [0, 0], sizes = [7, 128], strides = [1, 1]} : vector<8x128xf32> to vector<7x128xf32>
    %3 = vector.extract_strided_slice %0 {offsets = [1, 0], sizes = [7, 128], strides = [1, 1]} : vector<8x128xf32> to vector<7x128xf32>
    %4 = arith.subf %3, %2 : vector<7x128xf32>
    %5 = arith.addf %2, %3 : vector<7x128xf32>
    %6 = vector.extract_strided_slice %1 {offsets = [0, 0], sizes = [7, 128], strides = [1, 1]} : vector<8x128xf32> to vector<7x128xf32>
    %7 = vector.extract_strided_slice %1 {offsets = [1, 0], sizes = [7, 128], strides = [1, 1]} : vector<8x128xf32> to vector<7x128xf32>
    %8 = arith.addf %6, %7 : vector<7x128xf32>
    %cst = arith.constant 5.000000e-01 : f32
    %9 = vector.broadcast %cst : f32 to vector<7x128xf32>
    %10 = arith.mulf %8, %9 : vector<7x128xf32>
    %cst_3 = arith.constant 1.000000e+00 : f32
    %11 = vector.broadcast %cst_3 : f32 to vector<7x128xf32>
    %12 = arith.subf %10, %11 : vector<7x128xf32>
    %cst_4 = arith.constant 0.000000e+00 : f32
    %13 = vector.broadcast %cst_4 : f32 to vector<7x128xf32>
    %14 = arith.maximumf %12, %13 : vector<7x128xf32>
    %15 = math.absf %12 : vector<7x128xf32>
    %cst_5 = arith.constant 0.000000e+00 : f32
    %16 = vector.broadcast %cst_5 : f32 to vector<7x128xf32>
    %17 = arith.subf %16, %15 : vector<7x128xf32>
    %18 = math.exp %17 : vector<7x128xf32>
    %cst_6 = arith.constant 1.000000e+00 : f32
    %19 = vector.broadcast %cst_6 : f32 to vector<7x128xf32>
    %20 = arith.addf %19, %18 : vector<7x128xf32>
    %21 = math.log %20 : vector<7x128xf32>
    %22 = arith.addf %14, %21 : vector<7x128xf32>
    %23 = arith.mulf %22, %4 : vector<7x128xf32>
    %cst_7 = arith.constant 0.000000e+00 : f32
    %24 = vector.broadcast %cst_7 : f32 to vector<7x128xf32>
    %25 = arith.subf %24, %23 : vector<7x128xf32>
    %26 = math.exp %25 : vector<7x128xf32>
    %cst_8 = arith.constant 1.000000e+00 : f32
    %27 = vector.broadcast %cst_8 : f32 to vector<7x128xf32>
    %28 = arith.subf %27, %26 : vector<7x128xf32>
    %c0_9 = arith.constant 0 : index
    %c0_10 = arith.constant 0 : index
    %29 = vector.load %arg1[%c0_9, %c0_10] : memref<7x7xf32, #tpu.memory_space<vmem>>, vector<7x7xf32>
    %cst_11 = arith.constant dense<0.000000e+00> : vector<7x128xf32>
    %30 = tpu.matmul %29, %23, %cst_11 {dimension_numbers = #tpu.dot_dimension_numbers<[1], [0], [0], [1], [0, 0, 1, 1], [], []>, precision = #tpu.contract_precision<fp32>} : vector<7x7xf32>, vector<7x128xf32>, vector<7x128xf32> -> vector<7x128xf32>
    %cst_12 = arith.constant 0.000000e+00 : f32
    %31 = vector.broadcast %cst_12 : f32 to vector<7x128xf32>
    %32 = arith.subf %31, %30 : vector<7x128xf32>
    %33 = math.exp %32 : vector<7x128xf32>
    %34 = arith.mulf %28, %33 : vector<7x128xf32>
    %c0_13 = arith.constant 0 : index
    %c0_14 = arith.constant 0 : index
    %35 = vector.load %arg6[%c0_13, %c0_14] : memref<7x128xf32, #tpu.memory_space<vmem>>, vector<7x128xf32>
    tpu.vector_store %arg6[%c0_13, %c0_14], %34 {strides = array<i32>} : memref<7x128xf32, #tpu.memory_space<vmem>>, vector<7x128xf32>,
    %cst_15 = arith.constant dense<0.000000e+00> : vector<128xf32>
    %36 = vector.multi_reduction <add>, %34, %cst_15 [0] : vector<7x128xf32> to vector<128xf32>
    %37 = vector.shape_cast %36 : vector<128xf32> to vector<1x128xf32>
    %38 = arith.mulf %34, %5 : vector<7x128xf32>
    %cst_16 = arith.constant dense<0.000000e+00> : vector<128xf32>
    %39 = vector.multi_reduction <add>, %38, %cst_16 [0] : vector<7x128xf32> to vector<128xf32>
    %40 = vector.shape_cast %39 : vector<128xf32> to vector<1x128xf32>
    %cst_17 = arith.constant 5.000000e-01 : f32
    %41 = vector.broadcast %cst_17 : f32 to vector<1x128xf32>
    %42 = arith.mulf %41, %40 : vector<1x128xf32>
    %43 = arith.divf %42, %37 : vector<1x128xf32>
    %44 = arith.cmpf one, %43, %43 : vector<1x128xf32>
    %cst_18 = arith.constant 0x7F800000 : f32
    %45 = vector.broadcast %cst_18 : f32 to vector<1x128xf32>
    %46 = arith.select %44, %45, %43 : vector<1x128xi1>, vector<1x128xf32>
    %cst_19 = arith.constant 0.000000e+00 : f32
    %47 = vector.broadcast %cst_19 : f32 to vector<1x128xf32>
    %48 = tpu.concatenate %47, %34 in 0 : vector<1x128xf32>, vector<7x128xf32> -> vector<8x128xf32>
    %49 = tpu.concatenate %34, %47 in 0 : vector<7x128xf32>, vector<1x128xf32> -> vector<8x128xf32>
    %50 = arith.addf %48, %49 : vector<8x128xf32>
    %cst_20 = arith.constant 5.000000e-01 : f32
    %51 = vector.broadcast %cst_20 : f32 to vector<8x128xf32>
    %52 = arith.mulf %51, %50 : vector<8x128xf32>
    %c0_21 = arith.constant 0 : index
    %c0_22 = arith.constant 0 : index
    %c0_23 = arith.constant 0 : index
    %53 = vector.load %arg2[%c0_21, %c0_22, %c0_23] : memref<3x8x128xf32, #tpu.memory_space<vmem>>, vector<1x8x128xf32>
    %54 = vector.shape_cast %53 : vector<1x8x128xf32> to vector<8x128xf32>
    %55 = arith.mulf %54, %52 : vector<8x128xf32>
    %cst_24 = arith.constant dense<0.000000e+00> : vector<128xf32>
    %56 = vector.multi_reduction <add>, %55, %cst_24 [0] : vector<8x128xf32> to vector<128xf32>
    %57 = vector.shape_cast %56 : vector<128xf32> to vector<1x128xf32>
    %cst_25 = arith.constant 1.000000e+00 : f32
    %58 = vector.broadcast %cst_25 : f32 to vector<1x128xf32>
    %59 = arith.addf %57, %58 : vector<1x128xf32>
    %60 = arith.subf %59, %37 : vector<1x128xf32>
    %c0_26 = arith.constant 0 : index
    %c0_27 = arith.constant 0 : index
    %61 = vector.load %arg5[%c0_26, %c0_27] : memref<3x128xf32, #tpu.memory_space<vmem>>, vector<1x128xf32>
    tpu.vector_store %arg5[%c0_26, %c0_27], %60 {strides = array<i32>} : memref<3x128xf32, #tpu.memory_space<vmem>>, vector<1x128xf32>,
    %c1 = arith.constant 1 : index
    %c0_28 = arith.constant 0 : index
    %c0_29 = arith.constant 0 : index
    %62 = vector.load %arg2[%c1, %c0_28, %c0_29] : memref<3x8x128xf32, #tpu.memory_space<vmem>>, vector<1x8x128xf32>
    %63 = vector.shape_cast %62 : vector<1x8x128xf32> to vector<8x128xf32>
    %64 = arith.mulf %63, %52 : vector<8x128xf32>
    %cst_30 = arith.constant dense<0.000000e+00> : vector<128xf32>
    %65 = vector.multi_reduction <add>, %64, %cst_30 [0] : vector<8x128xf32> to vector<128xf32>
    %66 = vector.shape_cast %65 : vector<128xf32> to vector<1x128xf32>
    %cst_31 = arith.constant 1.000000e+00 : f32
    %67 = vector.broadcast %cst_31 : f32 to vector<1x128xf32>
    %68 = arith.addf %66, %67 : vector<1x128xf32>
    %69 = arith.subf %68, %37 : vector<1x128xf32>
    %c1_32 = arith.constant 1 : index
    %c0_33 = arith.constant 0 : index
    %70 = vector.load %arg5[%c1_32, %c0_33] : memref<3x128xf32, #tpu.memory_space<vmem>>, vector<1x128xf32>
    tpu.vector_store %arg5[%c1_32, %c0_33], %69 {strides = array<i32>} : memref<3x128xf32, #tpu.memory_space<vmem>>, vector<1x128xf32>,
    %c2 = arith.constant 2 : index
    %c0_34 = arith.constant 0 : index
    %c0_35 = arith.constant 0 : index
    %71 = vector.load %arg2[%c2, %c0_34, %c0_35] : memref<3x8x128xf32, #tpu.memory_space<vmem>>, vector<1x8x128xf32>
    %72 = vector.shape_cast %71 : vector<1x8x128xf32> to vector<8x128xf32>
    %73 = arith.mulf %72, %52 : vector<8x128xf32>
    %cst_36 = arith.constant dense<0.000000e+00> : vector<128xf32>
    %74 = vector.multi_reduction <add>, %73, %cst_36 [0] : vector<8x128xf32> to vector<128xf32>
    %75 = vector.shape_cast %74 : vector<128xf32> to vector<1x128xf32>
    %cst_37 = arith.constant 1.000000e+00 : f32
    %76 = vector.broadcast %cst_37 : f32 to vector<1x128xf32>
    %77 = arith.addf %75, %76 : vector<1x128xf32>
    %78 = arith.subf %77, %37 : vector<1x128xf32>
    %c2_38 = arith.constant 2 : index
    %c0_39 = arith.constant 0 : index
    %79 = vector.load %arg5[%c2_38, %c0_39] : memref<3x128xf32, #tpu.memory_space<vmem>>, vector<1x128xf32>
    tpu.vector_store %arg5[%c2_38, %c0_39], %78 {strides = array<i32>} : memref<3x128xf32, #tpu.memory_space<vmem>>, vector<1x128xf32>,
    %c0_40 = arith.constant 0 : index
    %c0_41 = arith.constant 0 : index
    %80 = vector.load %arg7[%c0_40, %c0_41] : memref<3x128xf32, #tpu.memory_space<vmem>>, vector<1x128xf32>
    tpu.vector_store %arg7[%c0_40, %c0_41], %46 {strides = array<i32>} : memref<3x128xf32, #tpu.memory_space<vmem>>, vector<1x128xf32>,
    %cst_42 = arith.constant dense<0x7F800000> : vector<128xf32>
    %81 = vector.multi_reduction <minimumf>, %0, %cst_42 [0] : vector<8x128xf32> to vector<128xf32>
    %82 = vector.shape_cast %81 : vector<128xf32> to vector<1x128xf32>
    %c1_43 = arith.constant 1 : index
    %c0_44 = arith.constant 0 : index
    %83 = vector.load %arg7[%c1_43, %c0_44] : memref<3x128xf32, #tpu.memory_space<vmem>>, vector<1x128xf32>
    tpu.vector_store %arg7[%c1_43, %c0_44], %82 {strides = array<i32>} : memref<3x128xf32, #tpu.memory_space<vmem>>, vector<1x128xf32>,
    %cst_45 = arith.constant dense<0xFF800000> : vector<128xf32>
    %84 = vector.multi_reduction <maximumf>, %0, %cst_45 [0] : vector<8x128xf32> to vector<128xf32>
    %85 = vector.shape_cast %84 : vector<128xf32> to vector<1x128xf32>
    %c2_46 = arith.constant 2 : index
    %c0_47 = arith.constant 0 : index
    %86 = vector.load %arg7[%c2_46, %c0_47] : memref<3x128xf32, #tpu.memory_space<vmem>>, vector<1x128xf32>
    tpu.vector_store %arg7[%c2_46, %c0_47], %85 {strides = array<i32>} : memref<3x128xf32, #tpu.memory_space<vmem>>, vector<1x128xf32>,
    return
  }
  func.func @transform_0(%arg0: i32) -> (i32, i32) {
    %c0_i32 = arith.constant 0 : i32
    %c0_i32_0 = arith.constant 0 : i32
    %c0_i32_1 = arith.constant 0 : i32
    return %c0_i32, %c0_i32_0 : i32, i32
  }
  func.func @transform_1(%arg0: i32) -> (i32, i32, i32) {
    %c0_i32 = arith.constant 0 : i32
    %c0_i32_0 = arith.constant 0 : i32
    %c0_i32_1 = arith.constant 0 : i32
    return %c0_i32, %c0_i32_0, %arg0 : i32, i32, i32
  }
  func.func @transform_2(%arg0: i32) -> (i32, i32) {
    %c0_i32 = arith.constant 0 : i32
    %c0_i32_0 = arith.constant 0 : i32
    return %c0_i32, %arg0 : i32, i32
  }
  func.func @transform_3(%arg0: i32) -> (i32, i32) {
    %c0_i32 = arith.constant 0 : i32
    %c0_i32_0 = arith.constant 0 : i32
    return %c0_i32, %arg0 : i32, i32
  }
  func.func @transform_4(%arg0: i32) -> (i32, i32) {
    %c0_i32 = arith.constant 0 : i32
    %c0_i32_0 = arith.constant 0 : i32
    return %c0_i32, %arg0 : i32, i32
  }
  func.func @transform_5(%arg0: i32) -> (i32, i32) {
    %c0_i32 = arith.constant 0 : i32
    %c0_i32_0 = arith.constant 0 : i32
    return %c0_i32, %arg0 : i32, i32
  }
  func.func @transform_6(%arg0: i32) -> (i32, i32) {
    %c0_i32 = arith.constant 0 : i32
    %c0_i32_0 = arith.constant 0 : i32
    return %c0_i32, %arg0 : i32, i32
  }
}

</mosaic_0001>

<llo_original>
// kernel: tpu_custom_call.1
$region0: #{tpu_custom_call.1}
  #allocation0 [shape = 'u32[]', space=smem, size = 0x4, offset = 0x4, fixed_abs, tag = 'smem constant byte address 0x4 - core index']
  #allocation1 [shape = 'u32[72,128]{1,0:T(1,128)}', space=vmem, size = 0x9000, scoped, tag = 'internal scratch']
  %s0 = inlined_call_operand.hbm [shape: f32[7,7], index: 0, kind: input, shape index: {}]
  %s1 = inlined_call_operand.hbm [shape: f32[3,8,128], index: 1, kind: input, shape index: {}]
  %s2 = inlined_call_operand.hbm [shape: f32[8,128], index: 2, kind: input, shape index: {}]
  %s3 = inlined_call_operand.hbm [shape: f32[8,128], index: 3, kind: input, shape index: {}]
  %s4 = inlined_call_operand.hbm [shape: f32[3,128], index: 4, kind: output, shape index: {0}]
  %s5 = inlined_call_operand.hbm [shape: f32[7,128], index: 5, kind: output, shape index: {1}]
  %s6 = inlined_call_operand.hbm [shape: f32[3,128], index: 6, kind: output, shape index: {2}]
  %7 = xla_tuple %s4, %s5, %s6
  %s8 = sld [smem:[#allocation0]]
  $region58: #{tpu_custom_call.1} parent=0
    _
  %s10 = ssub.s32 1, %s8
  %s11 = scalar_select 0, %s10, %s8
  $region1: #{tpu_custom_call.1} parent=0
    #allocation2 [shape = 'u8[4096]{0}', space=vmem, size = 0x1000, scoped, tag = 'input window, operand 0, single buffered']
    #allocation3 [shape = 's32[1]{0}', space=sflag, size = 0x4, scoped, tag = 'scoped memory for tpu_custom_call.1']
    #allocation4 [shape = 's32[1]{0}', space=sflag, size = 0x4, scoped, tag = 'scoped memory for tpu_custom_call.1']
    #allocation5 [shape = 'u8[12288]{0}', space=vmem, size = 0x3000, scoped, tag = 'input window, operand 1, single buffered']
    #allocation6 [shape = 's32[1]{0}', space=sflag, size = 0x4, scoped, tag = 'scoped memory for tpu_custom_call.1']
    #allocation7 [shape = 'u8[4096]{0}', space=vmem, size = 0x1000, scoped, tag = 'input window, operand 2, single buffered']
    #allocation8 [shape = 'u8[4096]{0}', space=vmem, size = 0x1000, scoped, tag = 'input window, operand 3, single buffered']
    #allocation9 [shape = 's32[1]{0}', space=sflag, size = 0x4, scoped, tag = 'scoped memory for tpu_custom_call.1']
    #allocation10 [shape = 'u8[2048]{0}', space=vmem, size = 0x800, scoped, tag = 'output window, operand 0, single buffered']
    #allocation11 [shape = 'u8[4096]{0}', space=vmem, size = 0x1000, scoped, tag = 'output window, operand 1, single buffered']
    #allocation12 [shape = 's32[1]{0}', space=sflag, size = 0x4, scoped, tag = 'scoped memory for tpu_custom_call.1']
    #allocation13 [shape = 'u8[2048]{0}', space=vmem, size = 0x800, scoped, tag = 'output window, operand 2, single buffered']
    %12 = vsyncpa [#allocation3], 0
    %13 = vsyncpa [#allocation6], 0
    %14 = vsyncpa [#allocation9], 0
    %15 = vsyncpa [#allocation4], 0
    %16 = vsyncpa [#allocation12], 0
    // Predicated region
    $region2: #{tpu_custom_call.1} parent=1 // pred_check
      _
    $region3: #{tpu_custom_call.1} parent=1 // pred_check_branch
      %18 = sbr.rel (0) target = $region5
    $region4: #{tpu_custom_call.1} parent=1 // pred_region
      %20 = vsyncadd [#allocation3], 0
      %s22 = sshll.u32 %s0, 4
      %s23 = int_to_ptr.hbm [resolvable:$true] %s22
      %s24 = sshll.u32 [#allocation2], 4
      %s25 = int_to_ptr.vmem [resolvable:$true] %s24
      %27 = dma.hbm_to_vmem [thread:$0]  %s23, 128, %s25, [#allocation3]
    $region5: #{tpu_custom_call.1} parent=1 // pred_fallthru
      _
    // Predicated region
    $region6: #{tpu_custom_call.1} parent=1 // pred_check
      _
    $region7: #{tpu_custom_call.1} parent=1 // pred_check_branch
      %29 = sbr.rel (0) target = $region9
    $region8: #{tpu_custom_call.1} parent=1 // pred_region
      %31 = vsyncadd [#allocation6], 0
      %s32 = sshll.u32 %s1, 4
      %s33 = int_to_ptr.hbm [resolvable:$true] %s32
      %s34 = sshll.u32 [#allocation5], 4
      %s35 = int_to_ptr.vmem [resolvable:$true] %s34
      %40 = dma.hbm_to_vmem [thread:$0]  %s33, 384, %s35, [#allocation6], 128, 128, 8
    $region9: #{tpu_custom_call.1} parent=1 // pred_fallthru
      _
    // Predicated region
    $region10: #{tpu_custom_call.1} parent=1 // pred_check
      _
    $region11: #{tpu_custom_call.1} parent=1 // pred_check_branch
      %42 = sbr.rel (0) target = $region13
    $region12: #{tpu_custom_call.1} parent=1 // pred_region
      %44 = vsyncadd [#allocation6], 0
      %s46 = sshll.u32 %s2, 4
      %s47 = int_to_ptr.hbm [resolvable:$true] %s46
      %s48 = sshll.u32 [#allocation7], 4
      %s49 = int_to_ptr.vmem [resolvable:$true] %s48
      %51 = dma.hbm_to_vmem [thread:$0]  %s47, 128, %s49, [#allocation6]
    $region13: #{tpu_custom_call.1} parent=1 // pred_fallthru
      _
    // Predicated region
    $region14: #{tpu_custom_call.1} parent=1 // pred_check
      _
    $region15: #{tpu_custom_call.1} parent=1 // pred_check_branch
      %53 = sbr.rel (0) target = $region17
    $region16: #{tpu_custom_call.1} parent=1 // pred_region
      %55 = vsyncadd [#allocation9], 0
      %s57 = sshll.u32 %s3, 4
      %s58 = int_to_ptr.hbm [resolvable:$true] %s57
      %s59 = sshll.u32 [#allocation8], 4
      %s60 = int_to_ptr.vmem [resolvable:$true] %s59
      %62 = dma.hbm_to_vmem [thread:$0]  %s58, 128, %s60, [#allocation9]
    $region17: #{tpu_custom_call.1} parent=1 // pred_fallthru
      _
    // Predicated region
    $region18: #{tpu_custom_call.1} parent=1 // pred_check
      _
    $region19: #{tpu_custom_call.1} parent=1 // pred_check_branch
      %64 = sbr.rel (0) target = $region21
    $region20: #{tpu_custom_call.1} parent=1 // pred_region
      %66 = dma.done [#allocation3], 128
    $region21: #{tpu_custom_call.1} parent=1 // pred_fallthru
      _
    // Predicated region
    $region22: #{tpu_custom_call.1} parent=1 // pred_check
      _
    $region23: #{tpu_custom_call.1} parent=1 // pred_check_branch
      %68 = sbr.rel (0) target = $region25
    $region24: #{tpu_custom_call.1} parent=1 // pred_region
      %70 = dma.done [#allocation6], 384
    $region25: #{tpu_custom_call.1} parent=1 // pred_fallthru
      _
    // Predicated region
    $region26: #{tpu_custom_call.1} parent=1 // pred_check
      _
    $region27: #{tpu_custom_call.1} parent=1 // pred_check_branch
      %72 = sbr.rel (0) target = $region29
    $region28: #{tpu_custom_call.1} parent=1 // pred_region
      %74 = dma.done [#allocation6], 128
    $region29: #{tpu_custom_call.1} parent=1 // pred_fallthru
      _
    // Predicated region
    $region30: #{tpu_custom_call.1} parent=1 // pred_check
      _
    $region31: #{tpu_custom_call.1} parent=1 // pred_check_branch
      %76 = sbr.rel (0) target = $region33
    $region32: #{tpu_custom_call.1} parent=1 // pred_region
      %78 = dma.done [#allocation9], 128
    $region33: #{tpu_custom_call.1} parent=1 // pred_fallthru
      _
    %v79 = vld [vmem:[#allocation8] sm:$0xff]
    %v80 = vld [vmem:[#allocation7] sm:$0xff]
    %v82 = vrot.slane %v79, 7
    %v84 = vsub.f32 %v79, %v82
    %v85 = vrot.slane %v79, 1
    %v87 = vadd.f32 %v79, %v85
    %v89 = vrot.slane %v80, 1
    %v91 = vadd.f32 %v80, %v89
    %v92 = vmul.f32 %v91, 0.5
    %v93 = vsub.f32 %v92, 1.0
    %v94 = vmax.f32 %v93, 0.0
    %v95 = vand.u32 2147483647, %v93
    %v96 = vsub.f32 0.0, %v95
    %v97 = vmul.f32 %v96, 1.442695
    %v98 = vpow.pop %v97
    %v99 = vadd.f32 %v98, 1.0
    %v100 = vlog2.pop %v99
    %v101 = vmul.f32 %v100, 0.6931472
    %v102 = vadd.f32 %v94, %v101
    %v104 = vrot.slane %v84, 1
    %v106 = vmul.f32 %v102, %v104
    %v107 = vsub.f32 0.0, %v106
    %v108 = vmul.f32 %v107, 1.442695
    %v109 = vpow.pop %v108
    %v110 = vsub.f32 1.0, %v109
    %v111 = vld [vmem:[#allocation2] sm:$0x7f]
    %vm112 = vcmask 56320
    %v114 = vsel %vm112, %v111, 0
    %vm116 = vcmask 1046528
    %v118 = vsel %vm116, %v106, 0
    %120 = vmatpush.msra.mxu0 0.0
    %121 = vmatpush.msra.mxu0 0.0
    %122 = vmatpush.msra.mxu0 0.0
    %123 = vmatpush.msra.mxu0 0.0
    %124 = vmatpush.msra.mxu0 0.0
    %125 = vmatpush.msra.mxu0 0.0
    %126 = vmatpush.msra.mxu0 0.0
    %127 = vmatpush.msra.mxu0 0.0
    %128 = vmatpush.msra.mxu0 0.0
    %129 = vmatpush.msra.mxu0 0.0
    %130 = vmatpush.msra.mxu0 0.0
    %131 = vmatpush.msra.mxu0 0.0
    %132 = vmatpush.msra.mxu0 0.0
    %133 = vmatpush.msra.mxu0 0.0
    %134 = vmatpush.msra.mxu0 0.0
    %v135 = vand.u32 %v118, 4294901760
    %136 = vmatpush.msra.mxu0 %v135
    %v137 = vand.u32 %v114, 4294901760
    %v138 = vsub.f32 %v114, %v137
    %v139 = vand.u32 %v138, 4294901760
    %v140 = vsub.f32 %v138, %v139
    %v141 = vand.u32 %v140, 4294901760
    %142 = vmatmul.f32.gmra.mxu0 %v141
    %v143 = vpop.f32.mrf.mxu0
    %v144 = vadd.f32 0.0, %v143
    %145 = vdwg.mxu0
    %146 = vmatpush.msra.mxu0 0.0
    %147 = vmatpush.msra.mxu0 0.0
    %148 = vmatpush.msra.mxu0 0.0
    %149 = vmatpush.msra.mxu0 0.0
    %150 = vmatpush.msra.mxu0 0.0
    %151 = vmatpush.msra.mxu0 0.0
    %152 = vmatpush.msra.mxu0 0.0
    %153 = vmatpush.msra.mxu0 0.0
    %154 = vmatpush.msra.mxu0 0.0
    %155 = vmatpush.msra.mxu0 0.0
    %156 = vmatpush.msra.mxu0 0.0
    %157 = vmatpush.msra.mxu0 0.0
    %158 = vmatpush.msra.mxu0 0.0
    %159 = vmatpush.msra.mxu0 0.0
    %160 = vmatpush.msra.mxu0 0.0
    %v161 = vand.u32 %v118, 4294901760
    %v162 = vsub.f32 %v118, %v161
    %v163 = vand.u32 %v162, 4294901760
    %v164 = vsub.f32 %v162, %v163
    %v165 = vand.u32 %v164, 4294901760
    %166 = vmatpush.msra.mxu0 %v165
    %v167 = vand.u32 %v114, 4294901760
    %168 = vmatmul.f32.gmra.mxu0 %v167
    %v169 = vpop.f32.mrf.mxu0
    %v170 = vadd.f32 %v144, %v169
    %171 = vdwg.mxu0
    %172 = vmatpush.msra.mxu0 0.0
    %173 = vmatpush.msra.mxu0 0.0
    %174 = vmatpush.msra.mxu0 0.0
    %175 = vmatpush.msra.mxu0 0.0
    %176 = vmatpush.msra.mxu0 0.0
    %177 = vmatpush.msra.mxu0 0.0
    %178 = vmatpush.msra.mxu0 0.0
    %179 = vmatpush.msra.mxu0 0.0
    %180 = vmatpush.msra.mxu0 0.0
    %181 = vmatpush.msra.mxu0 0.0
    %182 = vmatpush.msra.mxu0 0.0
    %183 = vmatpush.msra.mxu0 0.0
    %184 = vmatpush.msra.mxu0 0.0
    %185 = vmatpush.msra.mxu0 0.0
    %186 = vmatpush.msra.mxu0 0.0
    %v187 = vand.u32 %v118, 4294901760
    %v188 = vsub.f32 %v118, %v187
    %189 = vmatpush.msra.mxu0 %v188
    %v190 = vand.u32 %v114, 4294901760
    %v191 = vsub.f32 %v114, %v190
    %192 = vmatmul.f32.gmra.mxu0 %v191
    %v193 = vpop.f32.mrf.mxu0
    %v194 = vadd.f32 %v170, %v193
    %195 = vdwg.mxu0
    %196 = vmatpush.msra.mxu0 0.0
    %197 = vmatpush.msra.mxu0 0.0
    %198 = vmatpush.msra.mxu0 0.0
    %199 = vmatpush.msra.mxu0 0.0
    %200 = vmatpush.msra.mxu0 0.0
    %201 = vmatpush.msra.mxu0 0.0
    %202 = vmatpush.msra.mxu0 0.0
    %203 = vmatpush.msra.mxu0 0.0
    %204 = vmatpush.msra.mxu0 0.0
    %205 = vmatpush.msra.mxu0 0.0
    %206 = vmatpush.msra.mxu0 0.0
    %207 = vmatpush.msra.mxu0 0.0
    %208 = vmatpush.msra.mxu0 0.0
    %209 = vmatpush.msra.mxu0 0.0
    %210 = vmatpush.msra.mxu0 0.0
    %v211 = vand.u32 %v118, 4294901760
    %212 = vmatpush.msra.mxu0 %v211
    %v213 = vand.u32 %v114, 4294901760
    %v214 = vsub.f32 %v114, %v213
    %v215 = vand.u32 %v214, 4294901760
    %216 = vmatmul.f32.gmra.mxu0 %v215
    %v217 = vpop.f32.mrf.mxu0
    %v218 = vadd.f32 %v194, %v217
    %219 = vdwg.mxu0
    %220 = vmatpush.msra.mxu0 0.0
    %221 = vmatpush.msra.mxu0 0.0
    %222 = vmatpush.msra.mxu0 0.0
    %223 = vmatpush.msra.mxu0 0.0
    %224 = vmatpush.msra.mxu0 0.0
    %225 = vmatpush.msra.mxu0 0.0
    %226 = vmatpush.msra.mxu0 0.0
    %227 = vmatpush.msra.mxu0 0.0
    %228 = vmatpush.msra.mxu0 0.0
    %229 = vmatpush.msra.mxu0 0.0
    %230 = vmatpush.msra.mxu0 0.0
    %231 = vmatpush.msra.mxu0 0.0
    %232 = vmatpush.msra.mxu0 0.0
    %233 = vmatpush.msra.mxu0 0.0
    %234 = vmatpush.msra.mxu0 0.0
    %v235 = vand.u32 %v118, 4294901760
    %v236 = vsub.f32 %v118, %v235
    %v237 = vand.u32 %v236, 4294901760
    %238 = vmatpush.msra.mxu0 %v237
    %v239 = vand.u32 %v114, 4294901760
    %240 = vmatmul.f32.gmra.mxu0 %v239
    %v241 = vpop.f32.mrf.mxu0
    %v242 = vadd.f32 %v218, %v241
    %243 = vdwg.mxu0
    %244 = vmatpush.msra.mxu0 0.0
    %245 = vmatpush.msra.mxu0 0.0
    %246 = vmatpush.msra.mxu0 0.0
    %247 = vmatpush.msra.mxu0 0.0
    %248 = vmatpush.msra.mxu0 0.0
    %249 = vmatpush.msra.mxu0 0.0
    %250 = vmatpush.msra.mxu0 0.0
    %251 = vmatpush.msra.mxu0 0.0
    %252 = vmatpush.msra.mxu0 0.0
    %253 = vmatpush.msra.mxu0 0.0
    %254 = vmatpush.msra.mxu0 0.0
    %255 = vmatpush.msra.mxu0 0.0
    %256 = vmatpush.msra.mxu0 0.0
    %257 = vmatpush.msra.mxu0 0.0
    %258 = vmatpush.msra.mxu0 0.0
    %v259 = vand.u32 %v118, 4294901760
    %260 = vmatpush.msra.mxu0 %v259
    %v261 = vand.u32 %v114, 4294901760
    %262 = vmatmul.f32.gmra.mxu0 %v261
    %v263 = vpop.f32.mrf.mxu0
    %v264 = vadd.f32 %v242, %v263
    %265 = vdwg.mxu0
    %v266 = vsub.f32 0.0, %v264
    %v267 = vmul.f32 %v266, 1.442695
    %v268 = vpow.pop %v267
    %v269 = vmul.f32 %v110, %v268
    %270 = vst [vmem:[#allocation11] sm:$0x7f] %v269
    %v271 = vsel %vm116, %v269, 0.0
    %v272 = vrot.slane %v271, 4
    %v273 = vadd.f32 %v271, %v272
    %v274 = vrot.slane %v273, 2
    %v275 = vadd.f32 %v273, %v274
    %v276 = vrot.slane %v275, 1
    %v277 = vadd.f32 %v275, %v276
    %v278 = vmul.f32 %v269, %v87
    %v279 = vsel %vm116, %v278, 0.0
    %v280 = vrot.slane %v279, 4
    %v281 = vadd.f32 %v279, %v280
    %v282 = vrot.slane %v281, 2
    %v283 = vadd.f32 %v281, %v282
    %v284 = vrot.slane %v283, 1
    %v285 = vadd.f32 %v283, %v284
    %v286 = vmul.f32 %v285, 0.5
    %v287 = vrcp.pop %v277
    %v288 = vmul.f32 %v277, %v287
    %v289 = vsub.f32 1.0, %v288
    %v290 = vmul.f32 %v287, %v289
    %v291 = vadd.f32 %v287, %v290
    %vm292 = vweird.f32 %v277
    %vm293 = vweird.f32 %v287
    %vm294 = vmor %vm292, %vm293
    %v295 = vsel %vm294, %v287, %v291
    %v296 = vand.u32 2147483647, %v277
    %vm297 = vcmp.eq.f32.partialorder %v296, 8.507059e+37
    %v298 = vand.u32 %v277, 2147483648
    %v299 = vor.u32 1.1754944e-38, %v298
    %v300 = vsel %vm297, %v299, %v295
    %v301 = vmul.f32 %v286, %v300
    %vm302 = vcmp.ne.f32.partialorder %v301, %v301
    %v303 = vsel %vm302, inf, %v301
    %v305 = vrot.slane %v269, 7
    %vm307 = vcmask 1040384
    %v308 = vsel %vm307, 0.0, %v305
    %v309 = vadd.f32 %v308, %v271
    %v310 = vmul.f32 %v309, 0.5
    %v311 = vld [vmem:[#allocation5] sm:$0xff]
    %v312 = vmul.f32 %v311, %v310
    %v313 = vrot.slane %v312, 4
    %v314 = vadd.f32 %v312, %v313
    %v315 = vrot.slane %v314, 2
    %v316 = vadd.f32 %v314, %v315
    %v317 = vrot.slane %v316, 1
    %v318 = vadd.f32 %v316, %v317
    %v319 = vadd.f32 %v318, 1.0
    %v320 = vsub.f32 %v319, %v277
    %321 = vst [vmem:[#allocation10] sm:$0x1] %v320
    %s322 = scalar_lea.vmem [#allocation5], 8
    %v323 = vld [vmem:[%s322] sm:$0xff]
    %v324 = vmul.f32 %v323, %v310
    %v325 = vrot.slane %v324, 4
    %v326 = vadd.f32 %v324, %v325
    %v327 = vrot.slane %v326, 2
    %v328 = vadd.f32 %v326, %v327
    %v329 = vrot.slane %v328, 1
    %v330 = vadd.f32 %v328, %v329
    %v331 = vadd.f32 %v330, 1.0
    %v332 = vsub.f32 %v331, %v277
    %333 = vst [vmem:[#allocation10 + $0x1] sm:$0x1] %v332
    %s334 = scalar_lea.vmem [#allocation5], 16
    %v335 = vld [vmem:[%s334] sm:$0xff]
    %v336 = vmul.f32 %v335, %v310
    %v337 = vrot.slane %v336, 4
    %v338 = vadd.f32 %v336, %v337
    %v339 = vrot.slane %v338, 2
    %v340 = vadd.f32 %v338, %v339
    %v341 = vrot.slane %v340, 1
    %v342 = vadd.f32 %v340, %v341
    %v343 = vadd.f32 %v342, 1.0
    %v344 = vsub.f32 %v343, %v277
    %345 = vst [vmem:[#allocation10 + $0x2] sm:$0x1] %v344
    %346 = vst [vmem:[#allocation13] sm:$0x1] %v303
    %v347 = vrot.slane %v79, 4
    %v348 = vmin.f32 %v79, %v347
    %v349 = vrot.slane %v348, 2
    %v350 = vmin.f32 %v348, %v349
    %v351 = vrot.slane %v350, 1
    %v352 = vmin.f32 %v350, %v351
    %353 = vst [vmem:[#allocation13 + $0x1] sm:$0x1] %v352
    %v354 = vrot.slane %v79, 4
    %v355 = vmax.f32 %v79, %v354
    %v356 = vrot.slane %v355, 2
    %v357 = vmax.f32 %v355, %v356
    %v358 = vrot.slane %v357, 1
    %v359 = vmax.f32 %v357, %v358
    %360 = vst [vmem:[#allocation13 + $0x2] sm:$0x1] %v359
    // Predicated region
    $region34: #{tpu_custom_call.1} parent=1 // pred_check
      _
    $region35: #{tpu_custom_call.1} parent=1 // pred_check_branch
      %362 = sbr.rel (0) target = $region37
    $region36: #{tpu_custom_call.1} parent=1 // pred_region
      %364 = vsyncadd [#allocation4], 0
      %s366 = sshll.u32 [#allocation10], 4
      %s367 = int_to_ptr.vmem [resolvable:$true] %s366
      %s368 = sshll.u32 %s4, 4
      %s369 = int_to_ptr.hbm [resolvable:$true] %s368
      %371 = dma.vmem_to_hbm [thread:$0]  %s367, 64, %s369, [#allocation4]
    $region37: #{tpu_custom_call.1} parent=1 // pred_fallthru
      _
    // Predicated region
    $region38: #{tpu_custom_call.1} parent=1 // pred_check
      _
    $region39: #{tpu_custom_call.1} parent=1 // pred_check_branch
      %373 = sbr.rel (0) target = $region41
    $region40: #{tpu_custom_call.1} parent=1 // pred_region
      %375 = vsyncadd [#allocation12], 0
      %s377 = sshll.u32 [#allocation11], 4
      %s378 = int_to_ptr.vmem [resolvable:$true] %s377
      %s379 = sshll.u32 %s5, 4
      %s380 = int_to_ptr.hbm [resolvable:$true] %s379
      %382 = dma.vmem_to_hbm [thread:$0]  %s378, 128, %s380, [#allocation12]
    $region41: #{tpu_custom_call.1} parent=1 // pred_fallthru
      _
    // Predicated region
    $region42: #{tpu_custom_call.1} parent=1 // pred_check
      _
    $region43: #{tpu_custom_call.1} parent=1 // pred_check_branch
      %384 = sbr.rel (0) target = $region45
    $region44: #{tpu_custom_call.1} parent=1 // pred_region
      %386 = vsyncadd [#allocation12], 0
      %s388 = sshll.u32 [#allocation13], 4
      %s389 = int_to_ptr.vmem [resolvable:$true] %s388
      %s390 = sshll.u32 %s6, 4
      %s391 = int_to_ptr.hbm [resolvable:$true] %s390
      %393 = dma.vmem_to_hbm [thread:$0]  %s389, 64, %s391, [#allocation12]
    $region45: #{tpu_custom_call.1} parent=1 // pred_fallthru
      _
    // Predicated region
    $region46: #{tpu_custom_call.1} parent=1 // pred_check
      _
    $region47: #{tpu_custom_call.1} parent=1 // pred_check_branch
      %395 = sbr.rel (0) target = $region49
    $region48: #{tpu_custom_call.1} parent=1 // pred_region
      %397 = dma.done [#allocation4], 64
    $region49: #{tpu_custom_call.1} parent=1 // pred_fallthru
      _
    // Predicated region
    $region50: #{tpu_custom_call.1} parent=1 // pred_check
      _
    $region51: #{tpu_custom_call.1} parent=1 // pred_check_branch
      %399 = sbr.rel (0) target = $region53
    $region52: #{tpu_custom_call.1} parent=1 // pred_region
      %401 = dma.done [#allocation12], 128
    $region53: #{tpu_custom_call.1} parent=1 // pred_fallthru
      _
    // Predicated region
    $region54: #{tpu_custom_call.1} parent=1 // pred_check
      _
    $region55: #{tpu_custom_call.1} parent=1 // pred_check_branch
      %403 = sbr.rel (0) target = $region57
    $region56: #{tpu_custom_call.1} parent=1 // pred_region
      %405 = dma.done [#allocation12], 64
    $region57: #{tpu_custom_call.1} parent=1 // pred_fallthru
      _
    %406 = vsyncpa [#allocation3], 1
    %407 = vsyncpa [#allocation6], 1
    %408 = vsyncpa [#allocation9], 1
    %409 = vsyncpa [#allocation4], 1
    %410 = vsyncpa [#allocation12], 1

</llo_original>
